<compile_context>
chip_gen: v7x
topology: tpu7x:2x2x1
jax: 0.10.0
libtpu: 0.0.40
codegen_flags: <defaults>
</compile_context>

<pallas_src>
import math

import jax
import jax.numpy as jnp
from jax.experimental import pallas as pl
from jax.experimental.pallas import tpu as pltpu

MAX_PERIOD = 10000.0
_MIB = 1024 * 1024


def _round_up(x, m):
    return (x + m - 1) // m * m


def _device_kind():
    try:
        return jax.devices()[0].device_kind.lower()
    except Exception:
        return ""


def _vmem_capacity_bytes():
    """Physical VMEM per core (64 MiB on v7x, 128 MiB on v5e/v6e)."""
    try:
        cap = getattr(pltpu.get_tpu_info(), "vmem_capacity_bytes", None)
        if cap:
            return int(cap)
    except Exception:
        pass
    return 64 * _MIB if "v7" in _device_kind() else 128 * _MIB


def _pad_cast(x, shape, dtype):
    """Zero-pad x to `shape` and cast; no-op when already padded/typed."""
    x = x.astype(dtype)
    if tuple(x.shape) == tuple(shape):
        return x
    out = jnp.zeros(shape, dtype)
    return out.at[tuple(slice(0, s) for s in x.shape)].set(x)


def _freq_phase_table(D):
    """(2, D) f32 constant: row 0 = frequencies, row 1 = phase (0 or pi/2).

    sin(x) = cos(x - pi/2), so the kernel uses a single cosine per element.
    """
    half = D // 2
    freqs_half = jnp.exp(-math.log(MAX_PERIOD)
                         * jnp.arange(half, dtype=jnp.float32) / half)
    freqs = jnp.concatenate([freqs_half, freqs_half])
    phase = jnp.concatenate([jnp.zeros((half,), jnp.float32),
                             jnp.full((half,), jnp.pi / 2, jnp.float32)])
    return jnp.stack([freqs, phase]).astype(jnp.float32)


# ----------------------------------------------------------------------------
# Kernels
# ----------------------------------------------------------------------------
def _timestep_embedder_resident_kernel(t_ref, tbl_ref, w1_ref, b1_ref,
                                       w2_ref, b2_ref, o_ref):
    """One (tm, H_pad) row block with both weight matrices VMEM-resident."""
    t = t_ref[...]                                   # (tm, 1)
    freqs = tbl_ref[0:1, :]                          # (1, D)
    phase = tbl_ref[1:2, :]                          # (1, D)
    emb = jnp.cos(t * freqs - phase)                 # (tm, D) f32

    h = jnp.dot(emb.astype(w1_ref.dtype), w1_ref[...],
                preferred_element_type=jnp.float32) + b1_ref[...]
    h = h * jax.nn.sigmoid(h)                        # SiLU (exp on EUP slot)
    out = jnp.dot(h.astype(w2_ref.dtype), w2_ref[...],
                  preferred_element_type=jnp.float32) + b2_ref[...]
    o_ref[...] = out.astype(o_ref.dtype)


def _timestep_embedder_coltiled_kernel(t_ref, tbl_ref, w1_ref, b1_ref,
                                       w2_ref, b2_ref, o_ref, h_ref):
    """Column-tiled second matmul: w2 streamed as (H_pad, tn) slabs.

    The hidden activation h is computed once per row block (j == 0) into a
    VMEM scratch and reused for every output-column block.
    """
    j = pl.program_id(1)

    @pl.when(j == 0)
    def _():
        t = t_ref[...]
        freqs = tbl_ref[0:1, :]
        phase = tbl_ref[1:2, :]
        emb = jnp.cos(t * freqs - phase)
        h = jnp.dot(emb.astype(w1_ref.dtype), w1_ref[...],
                    preferred_element_type=jnp.float32) + b1_ref[...]
        h = h * jax.nn.sigmoid(h)
        h_ref[...] = h.astype(h_ref.dtype)

    out = jnp.dot(h_ref[...], w2_ref[...],
                  preferred_element_type=jnp.float32) + b2_ref[...]
    o_ref[...] = out.astype(o_ref.dtype)


# ----------------------------------------------------------------------------
# Parameter preparation (do this ONCE at init time, not per sampling step)
# ----------------------------------------------------------------------------
def prepare_timestep_embedder_params(w1, b1, w2, b2, *, use_bf16_matmul=True):
    """w1: (D, H); b1: (H,); w2: (H, H); b2: (H,) -> padded/cast param dict."""
    D, H = w1.shape
    assert D % 2 == 0, "frequency_embedding_size must be even"
    # TODO(synk): odd frequency_embedding_size (PyTorch zero-pads one column)
    # is not supported; the assert above prevents a silent wrong answer.
    H_pad = _round_up(H, 128)                        # lane-dense columns
    compute_dtype = jnp.bfloat16 if use_bf16_matmul else jnp.float32
    return dict(
        table=_freq_phase_table(D),
        w1=_pad_cast(w1, (D, H_pad), compute_dtype),
        b1=_pad_cast(b1.reshape(1, H), (1, H_pad), jnp.float32),
        w2=_pad_cast(w2, (H_pad, H_pad), compute_dtype),
        b2=_pad_cast(b2.reshape(1, H), (1, H_pad), jnp.float32),
        D=D, H=H, H_pad=H_pad, compute_dtype=compute_dtype,
    )


# ----------------------------------------------------------------------------
# Apply
# ----------------------------------------------------------------------------
def timestep_embedder_apply(t, params, *, out_dtype=jnp.float32,
                            force_column_tiled=False):
    """t: (N,) -> (N, H) embedding, dtype out_dtype."""
    table, w1, b1, w2, b2 = (params["table"], params["w1"], params["b1"],
                             params["w2"], params["b2"])
    D, H, H_pad = params["D"], params["H"], params["H_pad"]
    compute_dtype = params["compute_dtype"]
    wsize = jnp.dtype(compute_dtype).itemsize
    osize = jnp.dtype(out_dtype).itemsize

    N = t.shape[0]
    kind = _device_kind()
    # 256-row tiles match the 2x256 MXU cadence on v6e/v7x; keep 128 on v5e.
    tm_cap = 256 if (N >= 256 and "v5" not in kind) else 128
    tm = min(_round_up(N, 8), tm_cap)
    N_pad = _round_up(N, tm)
    n_row_blocks = N_pad // tm

    t2 = jnp.zeros((N_pad, 1), jnp.float32).at[:N, 0].set(t.astype(jnp.float32))

    vmem_budget = _vmem_capacity_bytes() - 4 * _MIB   # leave compiler headroom

    # VMEM estimate with invariant blocks single-buffered.
    invariant_bytes = (4 * 2 * D + wsize * D * H_pad + 4 * H_pad
                       + wsize * H_pad * H_pad + 4 * H_pad)
    resident_est = invariant_bytes + 2 * (4 * tm + osize * tm * H_pad)
    use_resident = (resident_est <= vmem_budget) and not force_column_tiled

    # Only shard the row axis across megacore TCs when per-core compute is
    # large enough to amortize the duplicated weight DMA.
    row_sem = "parallel" if n_row_blocks >= 4 else "arbitrary"

    cost = pl.CostEstimate(
        flops=int(2 * N_pad * H_pad * (D + H_pad)),
        transcendentals=int(N_pad * (D + H_pad)),        # cos + sigmoid's exp
        bytes_accessed=int(4 * N_pad + 4 * 2 * D
                           + wsize * (D * H_pad + H_pad * H_pad)
                           + 4 * 2 * H_pad + osize * N_pad * H_pad),
    )

    def call(single_buffer):
        def inv_spec(shape, index_map):
            # Grid-invariant block: single pipeline buffer (no prefetch waste).
            if single_buffer:
                return pl.BlockSpec(shape, index_map,
                                    pipeline_mode=pl.Buffered(1))
            return pl.BlockSpec(shape, index_map)

        if use_resident:
            est = resident_est + (0 if single_buffer else invariant_bytes)
            vmem_limit = int(min(max(est + 8 * _MIB, 32 * _MIB), vmem_budget))
            grid_spec = pltpu.PrefetchScalarGridSpec(
                num_scalar_prefetch=0,
                grid=(n_row_blocks,),
                in_specs=[
                    pl.BlockSpec((tm, 1), lambda i: (i, 0)),       # t rows
                    inv_spec((2, D), lambda i: (0, 0)),            # freq/phase
                    inv_spec((D, H_pad), lambda i: (0, 0)),        # w1
                    inv_spec((1, H_pad), lambda i: (0, 0)),        # b1
                    inv_spec((H_pad, H_pad), lambda i: (0, 0)),    # w2
                    inv_spec((1, H_pad), lambda i: (0, 0)),        # b2
                ],
                out_specs=pl.BlockSpec((tm, H_pad), lambda i: (i, 0)),
            )
            return pl.pallas_call(
                _timestep_embedder_resident_kernel,
                out_shape=jax.ShapeDtypeStruct((N_pad, H_pad), out_dtype),
                grid_spec=grid_spec,
                compiler_params=pltpu.CompilerParams(
                    dimension_semantics=(row_sem,),
                    vmem_limit_bytes=vmem_limit),
                cost_estimate=cost,
            )(t2, table, w1, b1, w2, b2)

        # ---- column-tiled w2 path (large H / small VMEM, e.g. v7x) --------
        tn = next(c for c in (512, 256, 128) if H_pad % c == 0)
        n_col_blocks = H_pad // tn
        inv_1x = 4 * 2 * D + wsize * D * H_pad + 4 * H_pad
        col_est = ((1 if single_buffer else 2) * inv_1x
                   + 2 * (4 * tm + wsize * H_pad * tn + 4 * tn
                          + osize * tm * tn)
                   + wsize * tm * H_pad)
        vmem_limit = int(min(max(col_est + 8 * _MIB, 32 * _MIB), vmem_budget))
        grid_spec = pltpu.PrefetchScalarGridSpec(
            num_scalar_prefetch=0,
            grid=(n_row_blocks, n_col_blocks),
            in_specs=[
                pl.BlockSpec((tm, 1), lambda i, j: (i, 0)),        # t rows
                inv_spec((2, D), lambda i, j: (0, 0)),             # freq/phase
                inv_spec((D, H_pad), lambda i, j: (0, 0)),         # w1
                inv_spec((1, H_pad), lambda i, j: (0, 0)),         # b1
                pl.BlockSpec((H_pad, tn), lambda i, j: (0, j)),    # w2 (streamed)
                pl.BlockSpec((1, tn), lambda i, j: (0, j)),        # b2
            ],
            out_specs=pl.BlockSpec((tm, tn), lambda i, j: (i, j)),
            scratch_shapes=[pltpu.VMEM((tm, H_pad), compute_dtype)],
        )
        return pl.pallas_call(
            _timestep_embedder_coltiled_kernel,
            out_shape=jax.ShapeDtypeStruct((N_pad, H_pad), out_dtype),
            grid_spec=grid_spec,
            compiler_params=pltpu.CompilerParams(
                dimension_semantics=(row_sem, "arbitrary"),
                vmem_limit_bytes=vmem_limit),
            cost_estimate=cost,
        )(t2, table, w1, b1, w2, b2)

    try:
        out = call(single_buffer=True)
    except Exception:
        # Fallback if this jax build rejects pl.Buffered(1): default buffering.
        out = call(single_buffer=False)

    return out[:N, :H]


def timestep_embedder(t, w1, b1, w2, b2, *, use_bf16_matmul=True,
                      out_dtype=jnp.float32):
    """Convenience wrapper. In a sampling loop, call
    prepare_timestep_embedder_params once and timestep_embedder_apply per step
    to avoid re-padding/re-casting the weights every call."""
    params = prepare_timestep_embedder_params(
        w1, b1, w2, b2, use_bf16_matmul=use_bf16_matmul)
    return timestep_embedder_apply(t, params, out_dtype=out_dtype)


# ----------------------------------------------------------------------------
# Pure-JAX reference mirroring the PyTorch forward
# ----------------------------------------------------------------------------
def reference(t, w1, b1, w2, b2):
    D = w1.shape[0]
    half = D // 2
    freqs = jnp.exp(-math.log(MAX_PERIOD)
                    * jnp.arange(half, dtype=jnp.float32) / half)
    args = t.astype(jnp.float32)[:, None] * freqs[None]
    emb = jnp.concatenate([jnp.cos(args), jnp.sin(args)], axis=-1)
    h = emb @ w1 + b1
    h = h * jax.nn.sigmoid(h)
    return h @ w2 + b2


if __name__ == "__main__":
    N = 8      # batch of timesteps
    D = 128    # frequency_embedding_size
    H = 32     # hidden_size

    key = jax.random.PRNGKey(0)
    k_t, k_w1, k_b1, k_w2, k_b2 = jax.random.split(key, 5)

    t = jax.random.uniform(k_t, (N,), jnp.float32, minval=0.0, maxval=1000.0)
    w1 = jax.random.normal(k_w1, (D, H), jnp.float32) * 0.02
    b1 = jax.random.normal(k_b1, (H,), jnp.float32) * 0.02
    w2 = jax.random.normal(k_w2, (H, H), jnp.float32) * 0.02
    b2 = jax.random.normal(k_b2, (H,), jnp.float32) * 0.02

    ref = reference(t, w1, b1, w2, b2)

    # 1) Exact-semantics path (f32 operands, resident-weights kernel).
    params_f32 = prepare_timestep_embedder_params(w1, b1, w2, b2,
                                                  use_bf16_matmul=False)
    out_f32 = jax.block_until_ready(timestep_embedder_apply(t, params_f32))
    assert out_f32.shape == (N, H)
    assert jnp.allclose(out_f32, ref, atol=1e-4, rtol=1e-4), "f32 path mismatch"

    # 2) Default fast path (bf16 operands, f32 accumulation).
    out_bf16 = jax.block_until_ready(timestep_embedder(t, w1, b1, w2, b2))
    assert out_bf16.shape == (N, H)
    assert jnp.allclose(out_bf16, ref, atol=1e-2, rtol=5e-2), "bf16 path mismatch"

    # 3) Column-tiled w2 path (large-H / v7x fallback), exercised at small H.
    out_ct = jax.block_until_ready(
        timestep_embedder_apply(t, params_f32, force_column_tiled=True))
    assert out_ct.shape == (N, H)
    assert jnp.allclose(out_ct, ref, atol=1e-4, rtol=1e-4), "col-tiled mismatch"

    print("KERNEL_OK")
</pallas_src>

<mosaic_0001>
module attributes {stable_mosaic.version = 11 : i64} {
  func.func @_timestep_embedder_resident_kernel(%arg0: i32, %arg1: memref<8x1xf32, #tpu.memory_space<vmem>>, %arg2: memref<2x128xf32, #tpu.memory_space<vmem>>, %arg3: memref<128x128xf32, #tpu.memory_space<vmem>>, %arg4: memref<1x128xf32, #tpu.memory_space<vmem>>, %arg5: memref<128x128xf32, #tpu.memory_space<vmem>>, %arg6: memref<1x128xf32, #tpu.memory_space<vmem>>, %arg7: memref<8x128xf32, #tpu.memory_space<vmem>>) attributes {dimension_semantics = [#tpu.dimension_semantics<arbitrary>], iteration_bounds = array<i64: 1>, scalar_prefetch = 0 : i64, scratch_operands = 0 : i64, tpu.core_type = #tpu.core_type<tc>, window_params = [{transform_indices = @transform_0, window_bounds = array<i64: 8, 1>}, {pipeline_mode = #tpu.pipeline_mode<synchronous>, transform_indices = @transform_1, window_bounds = array<i64: 2, 128>}, {pipeline_mode = #tpu.pipeline_mode<synchronous>, transform_indices = @transform_2, window_bounds = array<i64: 128, 128>}, {pipeline_mode = #tpu.pipeline_mode<synchronous>, transform_indices = @transform_3, window_bounds = array<i64: 1, 128>}, {pipeline_mode = #tpu.pipeline_mode<synchronous>, transform_indices = @transform_4, window_bounds = array<i64: 128, 128>}, {pipeline_mode = #tpu.pipeline_mode<synchronous>, transform_indices = @transform_5, window_bounds = array<i64: 1, 128>}, {transform_indices = @transform_6, window_bounds = array<i64: 8, 128>}]} {
    %c0 = arith.constant 0 : index
    %c0_0 = arith.constant 0 : index
    %0 = vector.load %arg1[%c0, %c0_0] : memref<8x1xf32, #tpu.memory_space<vmem>>, vector<8x1xf32>
    %c0_1 = arith.constant 0 : index
    %c0_2 = arith.constant 0 : index
    %1 = vector.load %arg2[%c0_1, %c0_2] : memref<2x128xf32, #tpu.memory_space<vmem>>, vector<1x128xf32>
    %c1 = arith.constant 1 : index
    %c0_3 = arith.constant 0 : index
    %2 = vector.load %arg2[%c1, %c0_3] : memref<2x128xf32, #tpu.memory_space<vmem>>, vector<1x128xf32>
    %3 = vector.broadcast %0 : vector<8x1xf32> to vector<8x128xf32>
    %4 = vector.broadcast %1 : vector<1x128xf32> to vector<8x128xf32>
    %5 = arith.mulf %3, %4 : vector<8x128xf32>
    %6 = vector.broadcast %2 : vector<1x128xf32> to vector<8x128xf32>
    %7 = arith.subf %5, %6 : vector<8x128xf32>
    %8 = math.cos %7 : vector<8x128xf32>
    %c0_4 = arith.constant 0 : index
    %c0_5 = arith.constant 0 : index
    %9 = vector.load %arg3[%c0_4, %c0_5] : memref<128x128xf32, #tpu.memory_space<vmem>>, vector<128x128xf32>
    %cst = arith.constant dense<0.000000e+00> : vector<8x128xf32>
    %10 = tpu.matmul %8, %9, %cst {dimension_numbers = #tpu.dot_dimension_numbers<[1], [0], [0], [1], [0, 0, 1, 1], [], []>} : vector<8x128xf32>, vector<128x128xf32>, vector<8x128xf32> -> vector<8x128xf32>
    %c0_6 = arith.constant 0 : index
    %c0_7 = arith.constant 0 : index
    %11 = vector.load %arg4[%c0_6, %c0_7] : memref<1x128xf32, #tpu.memory_space<vmem>>, vector<1x128xf32>
    %12 = vector.broadcast %11 : vector<1x128xf32> to vector<8x128xf32>
    %13 = arith.addf %10, %12 : vector<8x128xf32>
    %14 = arith.negf %13 : vector<8x128xf32>
    %15 = math.exp %14 : vector<8x128xf32>
    %cst_8 = arith.constant 1.000000e+00 : f32
    %16 = vector.broadcast %cst_8 : f32 to vector<8x128xf32>
    %17 = arith.addf %16, %15 : vector<8x128xf32>
    %18 = arith.divf %16, %17 : vector<8x128xf32>
    %19 = arith.mulf %13, %18 : vector<8x128xf32>
    %c0_9 = arith.constant 0 : index
    %c0_10 = arith.constant 0 : index
    %20 = vector.load %arg5[%c0_9, %c0_10] : memref<128x128xf32, #tpu.memory_space<vmem>>, vector<128x128xf32>
    %cst_11 = arith.constant dense<0.000000e+00> : vector<8x128xf32>
    %21 = tpu.matmul %19, %20, %cst_11 {dimension_numbers = #tpu.dot_dimension_numbers<[1], [0], [0], [1], [0, 0, 1, 1], [], []>} : vector<8x128xf32>, vector<128x128xf32>, vector<8x128xf32> -> vector<8x128xf32>
    %c0_12 = arith.constant 0 : index
    %c0_13 = arith.constant 0 : index
    %22 = vector.load %arg6[%c0_12, %c0_13] : memref<1x128xf32, #tpu.memory_space<vmem>>, vector<1x128xf32>
    %23 = vector.broadcast %22 : vector<1x128xf32> to vector<8x128xf32>
    %24 = arith.addf %21, %23 : vector<8x128xf32>
    %c0_14 = arith.constant 0 : index
    %c0_15 = arith.constant 0 : index
    %25 = vector.load %arg7[%c0_14, %c0_15] : memref<8x128xf32, #tpu.memory_space<vmem>>, vector<8x128xf32>
    tpu.vector_store %arg7[%c0_14, %c0_15], %24 {strides = array<i32>} : memref<8x128xf32, #tpu.memory_space<vmem>>, vector<8x128xf32>,
    return
  }
  func.func @transform_0(%arg0: i32) -> (i32, i32) {
    %c0_i32 = arith.constant 0 : i32
    %c0_i32_0 = arith.constant 0 : i32
    return %arg0, %c0_i32 : i32, i32
  }
  func.func @transform_1(%arg0: i32) -> (i32, i32) {
    %c0_i32 = arith.constant 0 : i32
    %c0_i32_0 = arith.constant 0 : i32
    %c0_i32_1 = arith.constant 0 : i32
    return %c0_i32, %c0_i32_0 : i32, i32
  }
  func.func @transform_2(%arg0: i32) -> (i32, i32) {
    %c0_i32 = arith.constant 0 : i32
    %c0_i32_0 = arith.constant 0 : i32
    %c0_i32_1 = arith.constant 0 : i32
    return %c0_i32, %c0_i32_0 : i32, i32
  }
  func.func @transform_3(%arg0: i32) -> (i32, i32) {
    %c0_i32 = arith.constant 0 : i32
    %c0_i32_0 = arith.constant 0 : i32
    %c0_i32_1 = arith.constant 0 : i32
    return %c0_i32, %c0_i32_0 : i32, i32
  }
  func.func @transform_4(%arg0: i32) -> (i32, i32) {
    %c0_i32 = arith.constant 0 : i32
    %c0_i32_0 = arith.constant 0 : i32
    %c0_i32_1 = arith.constant 0 : i32
    return %c0_i32, %c0_i32_0 : i32, i32
  }
  func.func @transform_5(%arg0: i32) -> (i32, i32) {
    %c0_i32 = arith.constant 0 : i32
    %c0_i32_0 = arith.constant 0 : i32
    %c0_i32_1 = arith.constant 0 : i32
    return %c0_i32, %c0_i32_0 : i32, i32
  }
  func.func @transform_6(%arg0: i32) -> (i32, i32) {
    %c0_i32 = arith.constant 0 : i32
    %c0_i32_0 = arith.constant 0 : i32
    return %arg0, %c0_i32 : i32, i32
  }
}

module attributes {stable_mosaic.version = 11 : i64} {
  func.func @_timestep_embedder_resident_kernel(%arg0: i32, %arg1: memref<8x1xf32, #tpu.memory_space<vmem>>, %arg2: memref<2x128xf32, #tpu.memory_space<vmem>>, %arg3: memref<128x128xf32, #tpu.memory_space<vmem>>, %arg4: memref<1x128xf32, #tpu.memory_space<vmem>>, %arg5: memref<128x128xf32, #tpu.memory_space<vmem>>, %arg6: memref<1x128xf32, #tpu.memory_space<vmem>>, %arg7: memref<8x128xf32, #tpu.memory_space<vmem>>) attributes {dimension_semantics = [#tpu.dimension_semantics<arbitrary>], iteration_bounds = array<i64: 1>, scalar_prefetch = 0 : i64, scratch_operands = 0 : i64, tpu.core_type = #tpu.core_type<tc>, window_params = [{transform_indices = @transform_0, window_bounds = array<i64: 8, 1>}, {pipeline_mode = #tpu.pipeline_mode<synchronous>, transform_indices = @transform_1, window_bounds = array<i64: 2, 128>}, {pipeline_mode = #tpu.pipeline_mode<synchronous>, transform_indices = @transform_2, window_bounds = array<i64: 128, 128>}, {pipeline_mode = #tpu.pipeline_mode<synchronous>, transform_indices = @transform_3, window_bounds = array<i64: 1, 128>}, {pipeline_mode = #tpu.pipeline_mode<synchronous>, transform_indices = @transform_4, window_bounds = array<i64: 128, 128>}, {pipeline_mode = #tpu.pipeline_mode<synchronous>, transform_indices = @transform_5, window_bounds = array<i64: 1, 128>}, {transform_indices = @transform_6, window_bounds = array<i64: 8, 128>}]} {
    %c0 = arith.constant 0 : index
    %c0_0 = arith.constant 0 : index
    %0 = vector.load %arg1[%c0, %c0_0] : memref<8x1xf32, #tpu.memory_space<vmem>>, vector<8x1xf32>
    %c0_1 = arith.constant 0 : index
    %c0_2 = arith.constant 0 : index
    %1 = vector.load %arg2[%c0_1, %c0_2] : memref<2x128xf32, #tpu.memory_space<vmem>>, vector<1x128xf32>
    %c1 = arith.constant 1 : index
    %c0_3 = arith.constant 0 : index
    %2 = vector.load %arg2[%c1, %c0_3] : memref<2x128xf32, #tpu.memory_space<vmem>>, vector<1x128xf32>
    %3 = vector.broadcast %0 : vector<8x1xf32> to vector<8x128xf32>
    %4 = vector.broadcast %1 : vector<1x128xf32> to vector<8x128xf32>
    %5 = arith.mulf %3, %4 : vector<8x128xf32>
    %6 = vector.broadcast %2 : vector<1x128xf32> to vector<8x128xf32>
    %7 = arith.subf %5, %6 : vector<8x128xf32>
    %8 = math.cos %7 : vector<8x128xf32>
    %c0_4 = arith.constant 0 : index
    %c0_5 = arith.constant 0 : index
    %9 = vector.load %arg3[%c0_4, %c0_5] : memref<128x128xf32, #tpu.memory_space<vmem>>, vector<128x128xf32>
    %cst = arith.constant dense<0.000000e+00> : vector<8x128xf32>
    %10 = tpu.matmul %8, %9, %cst {dimension_numbers = #tpu.dot_dimension_numbers<[1], [0], [0], [1], [0, 0, 1, 1], [], []>} : vector<8x128xf32>, vector<128x128xf32>, vector<8x128xf32> -> vector<8x128xf32>
    %c0_6 = arith.constant 0 : index
    %c0_7 = arith.constant 0 : index
    %11 = vector.load %arg4[%c0_6, %c0_7] : memref<1x128xf32, #tpu.memory_space<vmem>>, vector<1x128xf32>
    %12 = vector.broadcast %11 : vector<1x128xf32> to vector<8x128xf32>
    %13 = arith.addf %10, %12 : vector<8x128xf32>
    %14 = arith.negf %13 : vector<8x128xf32>
    %15 = math.exp %14 : vector<8x128xf32>
    %cst_8 = arith.constant 1.000000e+00 : f32
    %16 = vector.broadcast %cst_8 : f32 to vector<8x128xf32>
    %17 = arith.addf %16, %15 : vector<8x128xf32>
    %18 = arith.divf %16, %17 : vector<8x128xf32>
    %19 = arith.mulf %13, %18 : vector<8x128xf32>
    %c0_9 = arith.constant 0 : index
    %c0_10 = arith.constant 0 : index
    %20 = vector.load %arg5[%c0_9, %c0_10] : memref<128x128xf32, #tpu.memory_space<vmem>>, vector<128x128xf32>
    %cst_11 = arith.constant dense<0.000000e+00> : vector<8x128xf32>
    %21 = tpu.matmul %19, %20, %cst_11 {dimension_numbers = #tpu.dot_dimension_numbers<[1], [0], [0], [1], [0, 0, 1, 1], [], []>} : vector<8x128xf32>, vector<128x128xf32>, vector<8x128xf32> -> vector<8x128xf32>
    %c0_12 = arith.constant 0 : index
    %c0_13 = arith.constant 0 : index
    %22 = vector.load %arg6[%c0_12, %c0_13] : memref<1x128xf32, #tpu.memory_space<vmem>>, vector<1x128xf32>
    %23 = vector.broadcast %22 : vector<1x128xf32> to vector<8x128xf32>
    %24 = arith.addf %21, %23 : vector<8x128xf32>
    %c0_14 = arith.constant 0 : index
    %c0_15 = arith.constant 0 : index
    %25 = vector.load %arg7[%c0_14, %c0_15] : memref<8x128xf32, #tpu.memory_space<vmem>>, vector<8x128xf32>
    tpu.vector_store %arg7[%c0_14, %c0_15], %24 {strides = array<i32>} : memref<8x128xf32, #tpu.memory_space<vmem>>, vector<8x128xf32>,
    return
  }
  func.func @transform_0(%arg0: i32) -> (i32, i32) {
    %c0_i32 = arith.constant 0 : i32
    %c0_i32_0 = arith.constant 0 : i32
    return %arg0, %c0_i32 : i32, i32
  }
  func.func @transform_1(%arg0: i32) -> (i32, i32) {
    %c0_i32 = arith.constant 0 : i32
    %c0_i32_0 = arith.constant 0 : i32
    %c0_i32_1 = arith.constant 0 : i32
    return %c0_i32, %c0_i32_0 : i32, i32
  }
  func.func @transform_2(%arg0: i32) -> (i32, i32) {
    %c0_i32 = arith.constant 0 : i32
    %c0_i32_0 = arith.constant 0 : i32
    %c0_i32_1 = arith.constant 0 : i32
    return %c0_i32, %c0_i32_0 : i32, i32
  }
  func.func @transform_3(%arg0: i32) -> (i32, i32) {
    %c0_i32 = arith.constant 0 : i32
    %c0_i32_0 = arith.constant 0 : i32
    %c0_i32_1 = arith.constant 0 : i32
    return %c0_i32, %c0_i32_0 : i32, i32
  }
  func.func @transform_4(%arg0: i32) -> (i32, i32) {
    %c0_i32 = arith.constant 0 : i32
    %c0_i32_0 = arith.constant 0 : i32
    %c0_i32_1 = arith.constant 0 : i32
    return %c0_i32, %c0_i32_0 : i32, i32
  }
  func.func @transform_5(%arg0: i32) -> (i32, i32) {
    %c0_i32 = arith.constant 0 : i32
    %c0_i32_0 = arith.constant 0 : i32
    %c0_i32_1 = arith.constant 0 : i32
    return %c0_i32, %c0_i32_0 : i32, i32
  }
  func.func @transform_6(%arg0: i32) -> (i32, i32) {
    %c0_i32 = arith.constant 0 : i32
    %c0_i32_0 = arith.constant 0 : i32
    return %arg0, %c0_i32 : i32, i32
  }
}

</mosaic_0001>

<llo_original>
// kernel: tpu_custom_call.1
$region0: #{tpu_custom_call.1}
  #allocation0 [shape = 'u32[]', space=smem, size = 0x4, offset = 0x4, fixed_abs, tag = 'smem constant byte address 0x4 - core index']
  #allocation1 [shape = 'u32[144,128]{1,0:T(1,128)}', space=vmem, size = 0x12000, scoped, tag = 'internal scratch']
  %s0 = inlined_call_operand.vmem [shape: f32[8,1], index: 0, kind: input, shape index: {}]
  %s1 = inlined_call_operand.vmem [shape: f32[2,128], index: 1, kind: input, shape index: {}]
  %s2 = inlined_call_operand.hbm [shape: f32[128,128], index: 2, kind: input, shape index: {}]
  %s3 = inlined_call_operand.vmem [shape: f32[1,128], index: 3, kind: input, shape index: {}]
  %s4 = inlined_call_operand.hbm [shape: f32[128,128], index: 4, kind: input, shape index: {}]
  %s5 = inlined_call_operand.vmem [shape: f32[1,128], index: 5, kind: input, shape index: {}]
  %s6 = inlined_call_operand.hbm [shape: f32[8,128], index: 6, kind: output, shape index: {}]
  %s7 = sld [smem:[#allocation0]]
  $region42: #{tpu_custom_call.1} parent=0
    _
  %s9 = ssub.s32 1, %s7
  %s10 = scalar_select 0, %s9, %s7
  $region1: #{tpu_custom_call.1} parent=0
    #allocation2 [shape = 'u8[65536]{0}', space=vmem, size = 0x10000, scoped, tag = 'input window, operand 2, single buffered']
    #allocation3 [shape = 's32[1]{0}', space=sflag, size = 0x4, scoped, tag = 'scoped memory for tpu_custom_call.1']
    #allocation4 [shape = 's32[1]{0}', space=sflag, size = 0x4, scoped, tag = 'scoped memory for tpu_custom_call.1']
    #allocation5 [shape = 'u8[65536]{0}', space=vmem, size = 0x10000, scoped, tag = 'input window, operand 4, single buffered']
    #allocation6 [shape = 's32[1]{0}', space=sflag, size = 0x4, scoped, tag = 'scoped memory for tpu_custom_call.1']
    #allocation7 [shape = 'u8[4096]{0}', space=vmem, size = 0x1000, scoped, tag = 'output window, operand 0, single buffered']
    %11 = vsyncpa [#allocation3], 0
    %12 = vsyncpa [#allocation6], 0
    %13 = vsyncpa [#allocation4], 0
    // Predicated region
    $region2: #{tpu_custom_call.1} parent=1 // pred_check
      _
    $region3: #{tpu_custom_call.1} parent=1 // pred_check_branch
      %15 = sbr.rel (0) target = $region5
    $region4: #{tpu_custom_call.1} parent=1 // pred_region
      _
    $region5: #{tpu_custom_call.1} parent=1 // pred_fallthru
      _
    // Predicated region
    $region6: #{tpu_custom_call.1} parent=1 // pred_check
      _
    $region7: #{tpu_custom_call.1} parent=1 // pred_check_branch
      %17 = sbr.rel (0) target = $region9
    $region8: #{tpu_custom_call.1} parent=1 // pred_region
      _
    $region9: #{tpu_custom_call.1} parent=1 // pred_fallthru
      _
    // Predicated region
    $region10: #{tpu_custom_call.1} parent=1 // pred_check
      _
    $region11: #{tpu_custom_call.1} parent=1 // pred_check_branch
      %19 = sbr.rel (0) target = $region13
    $region12: #{tpu_custom_call.1} parent=1 // pred_region
      %s21 = ssub.s32 2048, 2048
      %22 = vsyncadd [#allocation3], %s21
      %s23 = sshll.u32 [#allocation2], 4
      %s24 = int_to_ptr.vmem [resolvable:$true] %s23
      %29 = dma.hbm_to_vmem [thread:$0]  %s2, 2048, %s24, [#allocation3], 128, 128, 8
    $region13: #{tpu_custom_call.1} parent=1 // pred_fallthru
      _
    // Predicated region
    $region14: #{tpu_custom_call.1} parent=1 // pred_check
      _
    $region15: #{tpu_custom_call.1} parent=1 // pred_check_branch
      %31 = sbr.rel (0) target = $region17
    $region16: #{tpu_custom_call.1} parent=1 // pred_region
      _
    $region17: #{tpu_custom_call.1} parent=1 // pred_fallthru
      _
    // Predicated region
    $region18: #{tpu_custom_call.1} parent=1 // pred_check
      _
    $region19: #{tpu_custom_call.1} parent=1 // pred_check_branch
      %33 = sbr.rel (0) target = $region21
    $region20: #{tpu_custom_call.1} parent=1 // pred_region
      %s35 = ssub.s32 2048, 2048
      %36 = vsyncadd [#allocation6], %s35
      %s37 = sshll.u32 [#allocation5], 4
      %s38 = int_to_ptr.vmem [resolvable:$true] %s37
      %43 = dma.hbm_to_vmem [thread:$0]  %s4, 2048, %s38, [#allocation6], 128, 128, 8
    $region21: #{tpu_custom_call.1} parent=1 // pred_fallthru
      _
    // Predicated region
    $region22: #{tpu_custom_call.1} parent=1 // pred_check
      _
    $region23: #{tpu_custom_call.1} parent=1 // pred_check_branch
      %45 = sbr.rel (0) target = $region25
    $region24: #{tpu_custom_call.1} parent=1 // pred_region
      _
    $region25: #{tpu_custom_call.1} parent=1 // pred_fallthru
      _
    // Predicated region
    $region26: #{tpu_custom_call.1} parent=1 // pred_check
      _
    $region27: #{tpu_custom_call.1} parent=1 // pred_check_branch
      %47 = sbr.rel (0) target = $region29
    $region28: #{tpu_custom_call.1} parent=1 // pred_region
      %48 = dma.done [#allocation3], 2048
    $region29: #{tpu_custom_call.1} parent=1 // pred_fallthru
      _
    // Predicated region
    $region30: #{tpu_custom_call.1} parent=1 // pred_check
      _
    $region31: #{tpu_custom_call.1} parent=1 // pred_check_branch
      %50 = sbr.rel (0) target = $region33
    $region32: #{tpu_custom_call.1} parent=1 // pred_region
      %51 = dma.done [#allocation6], 2048
    $region33: #{tpu_custom_call.1} parent=1 // pred_fallthru
      _
    %v52 = vld [vmem:[%s0] sm:$0xff]
    %v53 = vld [vmem:[%s1] sm:$0x1]
    %v54 = vld [vmem:[%s1 + $0x1] sm:$0x1]
    %56 = vset.pattern.permute.xlu0 0
    %57 = vperm.xlu0 %56, %v52
    %v58 = vpop.permute.xlu0 %57
    %v60 = vlaneseq
    %v61 = vshrl.u32 %v60, 7
    %v62 = vsub.s32 0, %v61
    %v63 = vrot.slane %v53, %v62
    %v64 = vmul.f32 %v58, %v63
    %v65 = vlaneseq
    %v66 = vshrl.u32 %v65, 7
    %v67 = vsub.s32 0, %v66
    %v68 = vrot.slane %v54, %v67
    %v69 = vsub.f32 %v64, %v68
    %v70 = vand.u32 2147483647, %v69
    %vm71 = vcmp.le.f32.partialorder %v70, 0.7853982
    %vm72 = vcmp.lt.s32.totalorder %v69, 0
    %v73 = vand.u32 %v69, 2139095040
    %v74 = vshrl.u32 %v73, 23
    %v75 = vsub.s32 %v74, 127
    %v76 = vand.u32 2147483647, %v69
    %v77 = vand.u32 %v76, 8388607
    %v78 = vor.u32 %v77, 8388608
    %v79 = vsub.s32 0, %v78
    %v80 = vadd.s32 %v75, 1
    %vm81 = vcmp.gt.s32.totalorder %v80, 0
    %v82 = vsel %vm81, %v80, 0
    %v83 = vshrl.u32 %v82, 5
    %v84 = vand.u32 %v82, 31
    %v85 = vsub.s32 32, %v84
    %v86 = vshrl.u32 683565275, %v85
    %v87 = vshll.u32 683565275, %v84
    %v88 = vshrl.u32 2475754826, %v85
    %v89 = vor.u32 %v87, %v88
    %v90 = vshll.u32 2475754826, %v84
    %v91 = vshrl.u32 2131351028, %v85
    %v92 = vor.u32 %v90, %v91
    %v93 = vshll.u32 2131351028, %v84
    %v94 = vshrl.u32 2102212464, %v85
    %v95 = vor.u32 %v93, %v94
    %v96 = vshll.u32 2102212464, %v84
    %v97 = vshrl.u32 920167782, %v85
    %v98 = vor.u32 %v96, %v97
    %v99 = vshll.u32 920167782, %v84
    %v100 = vshrl.u32 1326507024, %v85
    %v101 = vor.u32 %v99, %v100
    %vm102 = vcmp.lt.s32.totalorder %v83, 1
    %vm103 = vcmp.lt.s32.totalorder %v83, 2
    %vm104 = vcmp.lt.s32.totalorder %v83, 3
    %vm105 = vcmp.lt.s32.totalorder %v83, 4
    %v106 = vsel %vm102, %v86, %v89
    %v107 = vsel %vm105, %v95, 2102212464
    %v108 = vsel %vm104, %v92, %v107
    %v109 = vsel %vm103, %v106, %v108
    %v110 = vsel %vm102, %v89, %v92
    %v111 = vsel %vm105, %v98, 920167782
    %v112 = vsel %vm104, %v95, %v111
    %v113 = vsel %vm103, %v110, %v112
    %v114 = vsel %vm102, %v92, %v95
    %v115 = vsel %vm105, %v101, 1326507024
    %v116 = vsel %vm104, %v98, %v115
    %v117 = vsel %vm103, %v114, %v116
    %v118 = vshll.u32 %v78, 8
    %v119 = vmul.u32.u64.compose %v118, %v117
    %v120 = vextract.low.u32 %v119
    %v121 = vextract.high.u32 %v119
    %v122 = vmul.u32.u64.compose %v118, %v113
    %v123 = vextract.low.u32 %v122
    %v124 = vextract.high.u32 %v122
    %v125 = vmul.u32 %v118, %v109
    %v126 = vadd.s32 %v121, %v123
    %vm127 = vc.u32 %v121, %v123
    %v128 = vadd.s32 %v124, 1
    %v129 = vsel %vm127, %v128, %v124
    %v130 = vadd.s32 %v125, %v129
    %v131 = vadd.s32 %v130, 536870912
    %v132 = vshrl.u32 %v131, 30
    %v133 = vshll.u32 %v132, 30
    %v134 = vsub.s32 %v130, %v133
    %vm135 = vcmp.lt.s32.totalorder %v134, 0
    %v136 = vsub.s32 0, %v134
    %v137 = vsel %vm135, %v136, %v134
    %v138 = vclz %v137
    %v139 = vsub.s32 %v138, 2
    %vm140 = vcmp.gt.s32.totalorder 0, %v139
    %v141 = vsel %vm140, 0, %v139
    %v142 = vsub.s32 32, %v141
    %v143 = vshll.u32 %v134, %v141
    %v144 = vshrl.u32 %v126, %v142
    %v145 = vor.u32 %v143, %v144
    %v146 = vsub.s32 4294967266, %v141
    %v147 = vadd.s32 %v146, 127
    %v148 = vshll.u32 %v147, 23
    %v149 = vor.u32 4788187, %v148
    %v150 = vand.u32 2147483647, %v149
    %v152 = vcvt.s32.f32 %v145
    %v153 = vmul.f32 %v152, %v150
    %v154 = vxor.u32 %v153, 2147483648
    %v155 = vsel %vm72, %v154, %v153
    %v156 = vsub.s32 4, %v132
    %v157 = vsel %vm72, %v156, %v132
    %v158 = vsel %vm71, %v69, %v155
    %v159 = vsel %vm71, 0, %v157
    %v160 = vcosq.f32.pop %v158
    %v161 = vsinq.f32.pop %v158
    %vm162 = vweird.f32 %v69
    %v163 = vand.u32 %v159, 3
    %vm164 = vcmp.lt.s32.totalorder %v163, 2
    %vm165 = vcmp.eq.s32.totalorder %v163, 0
    %v166 = vxor.u32 %v161, 2147483648
    %v167 = vsel %vm165, %v160, %v166
    %vm168 = vcmp.eq.s32.totalorder %v163, 2
    %v169 = vxor.u32 %v160, 2147483648
    %v170 = vsel %vm168, %v169, %v161
    %v171 = vsel %vm164, %v167, %v170
    %v172 = vsel %vm162, nan, %v171
    %v173 = vld [vmem:[#allocation2] sm:$0xff]
    %v174 = vld [vmem:[#allocation2 + $0x8] sm:$0xff]
    %v175 = vld [vmem:[#allocation2 + $0x10] sm:$0xff]
    %v176 = vld [vmem:[#allocation2 + $0x18] sm:$0xff]
    %v177 = vld [vmem:[#allocation2 + $0x20] sm:$0xff]
    %v178 = vld [vmem:[#allocation2 + $0x28] sm:$0xff]
    %v179 = vld [vmem:[#allocation2 + $0x30] sm:$0xff]
    %v180 = vld [vmem:[#allocation2 + $0x38] sm:$0xff]
    %v181 = vld [vmem:[#allocation2 + $0x40] sm:$0xff]
    %v182 = vld [vmem:[#allocation2 + $0x48] sm:$0xff]
    %v183 = vld [vmem:[#allocation2 + $0x50] sm:$0xff]
    %v184 = vld [vmem:[#allocation2 + $0x58] sm:$0xff]
    %v185 = vld [vmem:[#allocation2 + $0x60] sm:$0xff]
    %v186 = vld [vmem:[#allocation2 + $0x68] sm:$0xff]
    %v187 = vld [vmem:[#allocation2 + $0x70] sm:$0xff]
    %v188 = vld [vmem:[#allocation2 + $0x78] sm:$0xff]
    %v189 = vld [vmem:[%s3] sm:$0x1]
    %v191 = vlaneseq
    %v192 = vshrl.u32 %v191, 7
    %v193 = vsub.s32 0, %v192
    %v194 = vrot.slane %v189, %v193
    %196 = vmatprep.subr.mxu0 0.0
    %197 = vmatpush1.msra.mxu0 %v173
    %198 = vmatprep.subr.mxu0 0.0
    %199 = vmatpush1.msra.mxu0 %v174
    %200 = vmatprep.subr.mxu0 0.0
    %201 = vmatpush1.msra.mxu0 %v175
    %202 = vmatprep.subr.mxu0 0.0
    %203 = vmatpush1.msra.mxu0 %v176
    %204 = vmatprep.subr.mxu0 0.0
    %205 = vmatpush1.msra.mxu0 %v177
    %206 = vmatprep.subr.mxu0 0.0
    %207 = vmatpush1.msra.mxu0 %v178
    %208 = vmatprep.subr.mxu0 0.0
    %209 = vmatpush1.msra.mxu0 %v179
    %210 = vmatprep.subr.mxu0 0.0
    %211 = vmatpush1.msra.mxu0 %v180
    %212 = vmatprep.subr.mxu0 0.0
    %213 = vmatpush1.msra.mxu0 %v181
    %214 = vmatprep.subr.mxu0 0.0
    %215 = vmatpush1.msra.mxu0 %v182
    %216 = vmatprep.subr.mxu0 0.0
    %217 = vmatpush1.msra.mxu0 %v183
    %218 = vmatprep.subr.mxu0 0.0
    %219 = vmatpush1.msra.mxu0 %v184
    %220 = vmatprep.subr.mxu0 0.0
    %221 = vmatpush1.msra.mxu0 %v185
    %222 = vmatprep.subr.mxu0 0.0
    %223 = vmatpush1.msra.mxu0 %v186
    %224 = vmatprep.subr.mxu0 0.0
    %225 = vmatpush1.msra.mxu0 %v187
    %226 = vmatprep.subr.mxu0 0.0
    %227 = vmatpush1.msra.mxu0 %v188
    %228 = vmatprep.subr.mxu0 0.0
    %229 = vmatpush1.msra.mxu0 0.0
    %230 = vmatprep.subr.mxu0 0.0
    %231 = vmatpush1.msra.mxu0 0.0
    %232 = vmatprep.subr.mxu0 0.0
    %233 = vmatpush1.msra.mxu0 0.0
    %234 = vmatprep.subr.mxu0 0.0
    %235 = vmatpush1.msra.mxu0 0.0
    %236 = vmatprep.subr.mxu0 0.0
    %237 = vmatpush1.msra.mxu0 0.0
    %238 = vmatprep.subr.mxu0 0.0
    %239 = vmatpush1.msra.mxu0 0.0
    %240 = vmatprep.subr.mxu0 0.0
    %241 = vmatpush1.msra.mxu0 0.0
    %242 = vmatprep.subr.mxu0 0.0
    %243 = vmatpush1.msra.mxu0 0.0
    %244 = vmatprep.subr.mxu0 0.0
    %245 = vmatpush1.msra.mxu0 0.0
    %246 = vmatprep.subr.mxu0 0.0
    %247 = vmatpush1.msra.mxu0 0.0
    %248 = vmatprep.subr.mxu0 0.0
    %249 = vmatpush1.msra.mxu0 0.0
    %250 = vmatprep.subr.mxu0 0.0
    %251 = vmatpush1.msra.mxu0 0.0
    %252 = vmatprep.subr.mxu0 0.0
    %253 = vmatpush1.msra.mxu0 0.0
    %254 = vmatprep.subr.mxu0 0.0
    %255 = vmatpush1.msra.mxu0 0.0
    %256 = vmatprep.subr.mxu0 0.0
    %257 = vmatpush1.msra.mxu0 0.0
    %258 = vmatprep.subr.mxu0 0.0
    %259 = vmatpush1.msra.mxu0 0.0
    %260 = vmatprep.mubr.f32.mxu0 0.0
    %261 = vmatmul.mubr.f32.gmra.mrb[0].mxu0 %v172
    %v262 = vpop.f32.mrb[0].mxu0
    %v263 = vadd.f32 %v194, %v262
    %v264 = vpop.f32.mrb[0].mxu0
    %265 = vdwg.mxu0
    %v266 = vxor.u32 %v263, 2147483648
    %v267 = vmul.f32 %v266, 1.442695
    %v268 = vpow.pop %v267
    %v269 = vadd.f32 %v268, 1.0
    %v270 = vrcp.pop %v269
    %v271 = vmul.f32 1.0, %v270
    %v272 = vmul.f32 %v263, %v271
    %v273 = vld [vmem:[#allocation5] sm:$0xff]
    %v274 = vld [vmem:[#allocation5 + $0x8] sm:$0xff]
    %v275 = vld [vmem:[#allocation5 + $0x10] sm:$0xff]
    %v276 = vld [vmem:[#allocation5 + $0x18] sm:$0xff]
    %v277 = vld [vmem:[#allocation5 + $0x20] sm:$0xff]
    %v278 = vld [vmem:[#allocation5 + $0x28] sm:$0xff]
    %v279 = vld [vmem:[#allocation5 + $0x30] sm:$0xff]
    %v280 = vld [vmem:[#allocation5 + $0x38] sm:$0xff]
    %v281 = vld [vmem:[#allocation5 + $0x40] sm:$0xff]
    %v282 = vld [vmem:[#allocation5 + $0x48] sm:$0xff]
    %v283 = vld [vmem:[#allocation5 + $0x50] sm:$0xff]
    %v284 = vld [vmem:[#allocation5 + $0x58] sm:$0xff]
    %v285 = vld [vmem:[#allocation5 + $0x60] sm:$0xff]
    %v286 = vld [vmem:[#allocation5 + $0x68] sm:$0xff]
    %v287 = vld [vmem:[#allocation5 + $0x70] sm:$0xff]
    %v288 = vld [vmem:[#allocation5 + $0x78] sm:$0xff]
    %v289 = vld [vmem:[%s5] sm:$0x1]
    %v291 = vlaneseq
    %v292 = vshrl.u32 %v291, 7
    %v293 = vsub.s32 0, %v292
    %v294 = vrot.slane %v289, %v293
    %296 = vmatprep.subr.mxu0 0.0
    %297 = vmatpush1.msra.mxu0 %v273
    %298 = vmatprep.subr.mxu0 0.0
    %299 = vmatpush1.msra.mxu0 %v274
    %300 = vmatprep.subr.mxu0 0.0
    %301 = vmatpush1.msra.mxu0 %v275
    %302 = vmatprep.subr.mxu0 0.0
    %303 = vmatpush1.msra.mxu0 %v276
    %304 = vmatprep.subr.mxu0 0.0
    %305 = vmatpush1.msra.mxu0 %v277
    %306 = vmatprep.subr.mxu0 0.0
    %307 = vmatpush1.msra.mxu0 %v278
    %308 = vmatprep.subr.mxu0 0.0
    %309 = vmatpush1.msra.mxu0 %v279
    %310 = vmatprep.subr.mxu0 0.0
    %311 = vmatpush1.msra.mxu0 %v280
    %312 = vmatprep.subr.mxu0 0.0
    %313 = vmatpush1.msra.mxu0 %v281
    %314 = vmatprep.subr.mxu0 0.0
    %315 = vmatpush1.msra.mxu0 %v282
    %316 = vmatprep.subr.mxu0 0.0
    %317 = vmatpush1.msra.mxu0 %v283
    %318 = vmatprep.subr.mxu0 0.0
    %319 = vmatpush1.msra.mxu0 %v284
    %320 = vmatprep.subr.mxu0 0.0
    %321 = vmatpush1.msra.mxu0 %v285
    %322 = vmatprep.subr.mxu0 0.0
    %323 = vmatpush1.msra.mxu0 %v286
    %324 = vmatprep.subr.mxu0 0.0
    %325 = vmatpush1.msra.mxu0 %v287
    %326 = vmatprep.subr.mxu0 0.0
    %327 = vmatpush1.msra.mxu0 %v288
    %328 = vmatprep.subr.mxu0 0.0
    %329 = vmatpush1.msra.mxu0 0.0
    %330 = vmatprep.subr.mxu0 0.0
    %331 = vmatpush1.msra.mxu0 0.0
    %332 = vmatprep.subr.mxu0 0.0
    %333 = vmatpush1.msra.mxu0 0.0
    %334 = vmatprep.subr.mxu0 0.0
    %335 = vmatpush1.msra.mxu0 0.0
    %336 = vmatprep.subr.mxu0 0.0
    %337 = vmatpush1.msra.mxu0 0.0
    %338 = vmatprep.subr.mxu0 0.0
    %339 = vmatpush1.msra.mxu0 0.0
    %340 = vmatprep.subr.mxu0 0.0
    %341 = vmatpush1.msra.mxu0 0.0
    %342 = vmatprep.subr.mxu0 0.0
    %343 = vmatpush1.msra.mxu0 0.0
    %344 = vmatprep.subr.mxu0 0.0
    %345 = vmatpush1.msra.mxu0 0.0
    %346 = vmatprep.subr.mxu0 0.0
    %347 = vmatpush1.msra.mxu0 0.0
    %348 = vmatprep.subr.mxu0 0.0
    %349 = vmatpush1.msra.mxu0 0.0
    %350 = vmatprep.subr.mxu0 0.0
    %351 = vmatpush1.msra.mxu0 0.0
    %352 = vmatprep.subr.mxu0 0.0
    %353 = vmatpush1.msra.mxu0 0.0
    %354 = vmatprep.subr.mxu0 0.0
    %355 = vmatpush1.msra.mxu0 0.0
    %356 = vmatprep.subr.mxu0 0.0
    %357 = vmatpush1.msra.mxu0 0.0
    %358 = vmatprep.subr.mxu0 0.0
    %359 = vmatpush1.msra.mxu0 0.0
    %360 = vmatprep.mubr.f32.mxu0 0.0
    %361 = vmatmul.mubr.f32.gmra.mrb[0].mxu0 %v272
    %v362 = vpop.f32.mrb[0].mxu0
    %v363 = vadd.f32 %v294, %v362
    %v364 = vpop.f32.mrb[0].mxu0
    %365 = vdwg.mxu0
    %366 = vst [vmem:[#allocation7] sm:$0xff] %v363
    // Predicated region
    $region34: #{tpu_custom_call.1} parent=1 // pred_check
      _
    $region35: #{tpu_custom_call.1} parent=1 // pred_check_branch
      %368 = sbr.rel (0) target = $region37
    $region36: #{tpu_custom_call.1} parent=1 // pred_region
      %s370 = ssub.s32 128, 128
      %371 = vsyncadd [#allocation4], %s370
      %s373 = sshll.u32 [#allocation7], 4
      %s374 = int_to_ptr.vmem [resolvable:$true] %s373
      %376 = dma.vmem_to_hbm [thread:$0]  %s374, 128, %s6, [#allocation4]
    $region37: #{tpu_custom_call.1} parent=1 // pred_fallthru
      _
    // Predicated region
    $region38: #{tpu_custom_call.1} parent=1 // pred_check
      _
    $region39: #{tpu_custom_call.1} parent=1 // pred_check_branch
      %378 = sbr.rel (0) target = $region41
    $region40: #{tpu_custom_call.1} parent=1 // pred_region
      %379 = dma.done [#allocation4], 128
    $region41: #{tpu_custom_call.1} parent=1 // pred_fallthru
      _
    %380 = vsyncpa [#allocation3], 1
    %381 = vsyncpa [#allocation6], 1
    %382 = vsyncpa [#allocation4], 1

// kernel: tpu_custom_call.1
$region0: #{tpu_custom_call.1}
  #allocation0 [shape = 'u32[]', space=smem, size = 0x4, offset = 0x4, fixed_abs, tag = 'smem constant byte address 0x4 - core index']
  #allocation1 [shape = 'u32[144,128]{1,0:T(1,128)}', space=vmem, size = 0x12000, scoped, tag = 'internal scratch']
  %s0 = inlined_call_operand.vmem [shape: f32[8,1], index: 0, kind: input, shape index: {}]
  %s1 = inlined_call_operand.vmem [shape: f32[2,128], index: 1, kind: input, shape index: {}]
  %s2 = inlined_call_operand.hbm [shape: f32[128,128], index: 2, kind: input, shape index: {}]
  %s3 = inlined_call_operand.vmem [shape: f32[1,128], index: 3, kind: input, shape index: {}]
  %s4 = inlined_call_operand.hbm [shape: f32[128,128], index: 4, kind: input, shape index: {}]
  %s5 = inlined_call_operand.vmem [shape: f32[1,128], index: 5, kind: input, shape index: {}]
  %s6 = inlined_call_operand.hbm [shape: f32[8,128], index: 6, kind: output, shape index: {}]
  %s7 = sld [smem:[#allocation0]]
  $region42: #{tpu_custom_call.1} parent=0
    _
  %s9 = ssub.s32 1, %s7
  %s10 = scalar_select 0, %s9, %s7
  $region1: #{tpu_custom_call.1} parent=0
    #allocation2 [shape = 'u8[65536]{0}', space=vmem, size = 0x10000, scoped, tag = 'input window, operand 2, single buffered']
    #allocation3 [shape = 's32[1]{0}', space=sflag, size = 0x4, scoped, tag = 'scoped memory for tpu_custom_call.1']
    #allocation4 [shape = 's32[1]{0}', space=sflag, size = 0x4, scoped, tag = 'scoped memory for tpu_custom_call.1']
    #allocation5 [shape = 'u8[65536]{0}', space=vmem, size = 0x10000, scoped, tag = 'input window, operand 4, single buffered']
    #allocation6 [shape = 's32[1]{0}', space=sflag, size = 0x4, scoped, tag = 'scoped memory for tpu_custom_call.1']
    #allocation7 [shape = 'u8[4096]{0}', space=vmem, size = 0x1000, scoped, tag = 'output window, operand 0, single buffered']
    %11 = vsyncpa [#allocation3], 0
    %12 = vsyncpa [#allocation6], 0
    %13 = vsyncpa [#allocation4], 0
    // Predicated region
    $region2: #{tpu_custom_call.1} parent=1 // pred_check
      _
    $region3: #{tpu_custom_call.1} parent=1 // pred_check_branch
      %15 = sbr.rel (0) target = $region5
    $region4: #{tpu_custom_call.1} parent=1 // pred_region
      _
    $region5: #{tpu_custom_call.1} parent=1 // pred_fallthru
      _
    // Predicated region
    $region6: #{tpu_custom_call.1} parent=1 // pred_check
      _
    $region7: #{tpu_custom_call.1} parent=1 // pred_check_branch
      %17 = sbr.rel (0) target = $region9
    $region8: #{tpu_custom_call.1} parent=1 // pred_region
      _
    $region9: #{tpu_custom_call.1} parent=1 // pred_fallthru
      _
    // Predicated region
    $region10: #{tpu_custom_call.1} parent=1 // pred_check
      _
    $region11: #{tpu_custom_call.1} parent=1 // pred_check_branch
      %19 = sbr.rel (0) target = $region13
    $region12: #{tpu_custom_call.1} parent=1 // pred_region
      %s21 = ssub.s32 2048, 2048
      %22 = vsyncadd [#allocation3], %s21
      %s23 = sshll.u32 [#allocation2], 4
      %s24 = int_to_ptr.vmem [resolvable:$true] %s23
      %29 = dma.hbm_to_vmem [thread:$0]  %s2, 2048, %s24, [#allocation3], 128, 128, 8
    $region13: #{tpu_custom_call.1} parent=1 // pred_fallthru
      _
    // Predicated region
    $region14: #{tpu_custom_call.1} parent=1 // pred_check
      _
    $region15: #{tpu_custom_call.1} parent=1 // pred_check_branch
      %31 = sbr.rel (0) target = $region17
    $region16: #{tpu_custom_call.1} parent=1 // pred_region
      _
    $region17: #{tpu_custom_call.1} parent=1 // pred_fallthru
      _
    // Predicated region
    $region18: #{tpu_custom_call.1} parent=1 // pred_check
      _
    $region19: #{tpu_custom_call.1} parent=1 // pred_check_branch
      %33 = sbr.rel (0) target = $region21
    $region20: #{tpu_custom_call.1} parent=1 // pred_region
      %s35 = ssub.s32 2048, 2048
      %36 = vsyncadd [#allocation6], %s35
      %s37 = sshll.u32 [#allocation5], 4
      %s38 = int_to_ptr.vmem [resolvable:$true] %s37
      %43 = dma.hbm_to_vmem [thread:$0]  %s4, 2048, %s38, [#allocation6], 128, 128, 8
    $region21: #{tpu_custom_call.1} parent=1 // pred_fallthru
      _
    // Predicated region
    $region22: #{tpu_custom_call.1} parent=1 // pred_check
      _
    $region23: #{tpu_custom_call.1} parent=1 // pred_check_branch
      %45 = sbr.rel (0) target = $region25
    $region24: #{tpu_custom_call.1} parent=1 // pred_region
      _
    $region25: #{tpu_custom_call.1} parent=1 // pred_fallthru
      _
    // Predicated region
    $region26: #{tpu_custom_call.1} parent=1 // pred_check
      _
    $region27: #{tpu_custom_call.1} parent=1 // pred_check_branch
      %47 = sbr.rel (0) target = $region29
    $region28: #{tpu_custom_call.1} parent=1 // pred_region
      %48 = dma.done [#allocation3], 2048
    $region29: #{tpu_custom_call.1} parent=1 // pred_fallthru
      _
    // Predicated region
    $region30: #{tpu_custom_call.1} parent=1 // pred_check
      _
    $region31: #{tpu_custom_call.1} parent=1 // pred_check_branch
      %50 = sbr.rel (0) target = $region33
    $region32: #{tpu_custom_call.1} parent=1 // pred_region
      %51 = dma.done [#allocation6], 2048
    $region33: #{tpu_custom_call.1} parent=1 // pred_fallthru
      _
    %v52 = vld [vmem:[%s0] sm:$0xff]
    %v53 = vld [vmem:[%s1] sm:$0x1]
    %v54 = vld [vmem:[%s1 + $0x1] sm:$0x1]
    %56 = vset.pattern.permute.xlu0 0
    %57 = vperm.xlu0 %56, %v52
    %v58 = vpop.permute.xlu0 %57
    %v60 = vlaneseq
    %v61 = vshrl.u32 %v60, 7
    %v62 = vsub.s32 0, %v61
    %v63 = vrot.slane %v53, %v62
    %v64 = vmul.f32 %v58, %v63
    %v65 = vlaneseq
    %v66 = vshrl.u32 %v65, 7
    %v67 = vsub.s32 0, %v66
    %v68 = vrot.slane %v54, %v67
    %v69 = vsub.f32 %v64, %v68
    %v70 = vand.u32 2147483647, %v69
    %vm71 = vcmp.le.f32.partialorder %v70, 0.7853982
    %vm72 = vcmp.lt.s32.totalorder %v69, 0
    %v73 = vand.u32 %v69, 2139095040
    %v74 = vshrl.u32 %v73, 23
    %v75 = vsub.s32 %v74, 127
    %v76 = vand.u32 2147483647, %v69
    %v77 = vand.u32 %v76, 8388607
    %v78 = vor.u32 %v77, 8388608
    %v79 = vsub.s32 0, %v78
    %v80 = vadd.s32 %v75, 1
    %vm81 = vcmp.gt.s32.totalorder %v80, 0
    %v82 = vsel %vm81, %v80, 0
    %v83 = vshrl.u32 %v82, 5
    %v84 = vand.u32 %v82, 31
    %v85 = vsub.s32 32, %v84
    %v86 = vshrl.u32 683565275, %v85
    %v87 = vshll.u32 683565275, %v84
    %v88 = vshrl.u32 2475754826, %v85
    %v89 = vor.u32 %v87, %v88
    %v90 = vshll.u32 2475754826, %v84
    %v91 = vshrl.u32 2131351028, %v85
    %v92 = vor.u32 %v90, %v91
    %v93 = vshll.u32 2131351028, %v84
    %v94 = vshrl.u32 2102212464, %v85
    %v95 = vor.u32 %v93, %v94
    %v96 = vshll.u32 2102212464, %v84
    %v97 = vshrl.u32 920167782, %v85
    %v98 = vor.u32 %v96, %v97
    %v99 = vshll.u32 920167782, %v84
    %v100 = vshrl.u32 1326507024, %v85
    %v101 = vor.u32 %v99, %v100
    %vm102 = vcmp.lt.s32.totalorder %v83, 1
    %vm103 = vcmp.lt.s32.totalorder %v83, 2
    %vm104 = vcmp.lt.s32.totalorder %v83, 3
    %vm105 = vcmp.lt.s32.totalorder %v83, 4
    %v106 = vsel %vm102, %v86, %v89
    %v107 = vsel %vm105, %v95, 2102212464
    %v108 = vsel %vm104, %v92, %v107
    %v109 = vsel %vm103, %v106, %v108
    %v110 = vsel %vm102, %v89, %v92
    %v111 = vsel %vm105, %v98, 920167782
    %v112 = vsel %vm104, %v95, %v111
    %v113 = vsel %vm103, %v110, %v112
    %v114 = vsel %vm102, %v92, %v95
    %v115 = vsel %vm105, %v101, 1326507024
    %v116 = vsel %vm104, %v98, %v115
    %v117 = vsel %vm103, %v114, %v116
    %v118 = vshll.u32 %v78, 8
    %v119 = vmul.u32.u64.compose %v118, %v117
    %v120 = vextract.low.u32 %v119
    %v121 = vextract.high.u32 %v119
    %v122 = vmul.u32.u64.compose %v118, %v113
    %v123 = vextract.low.u32 %v122
    %v124 = vextract.high.u32 %v122
    %v125 = vmul.u32 %v118, %v109
    %v126 = vadd.s32 %v121, %v123
    %vm127 = vc.u32 %v121, %v123
    %v128 = vadd.s32 %v124, 1
    %v129 = vsel %vm127, %v128, %v124
    %v130 = vadd.s32 %v125, %v129
    %v131 = vadd.s32 %v130, 536870912
    %v132 = vshrl.u32 %v131, 30
    %v133 = vshll.u32 %v132, 30
    %v134 = vsub.s32 %v130, %v133
    %vm135 = vcmp.lt.s32.totalorder %v134, 0
    %v136 = vsub.s32 0, %v134
    %v137 = vsel %vm135, %v136, %v134
    %v138 = vclz %v137
    %v139 = vsub.s32 %v138, 2
    %vm140 = vcmp.gt.s32.totalorder 0, %v139
    %v141 = vsel %vm140, 0, %v139
    %v142 = vsub.s32 32, %v141
    %v143 = vshll.u32 %v134, %v141
    %v144 = vshrl.u32 %v126, %v142
    %v145 = vor.u32 %v143, %v144
    %v146 = vsub.s32 4294967266, %v141
    %v147 = vadd.s32 %v146, 127
    %v148 = vshll.u32 %v147, 23
    %v149 = vor.u32 4788187, %v148
    %v150 = vand.u32 2147483647, %v149
    %v152 = vcvt.s32.f32 %v145
    %v153 = vmul.f32 %v152, %v150
    %v154 = vxor.u32 %v153, 2147483648
    %v155 = vsel %vm72, %v154, %v153
    %v156 = vsub.s32 4, %v132
    %v157 = vsel %vm72, %v156, %v132
    %v158 = vsel %vm71, %v69, %v155
    %v159 = vsel %vm71, 0, %v157
    %v160 = vcosq.f32.pop %v158
    %v161 = vsinq.f32.pop %v158
    %vm162 = vweird.f32 %v69
    %v163 = vand.u32 %v159, 3
    %vm164 = vcmp.lt.s32.totalorder %v163, 2
    %vm165 = vcmp.eq.s32.totalorder %v163, 0
    %v166 = vxor.u32 %v161, 2147483648
    %v167 = vsel %vm165, %v160, %v166
    %vm168 = vcmp.eq.s32.totalorder %v163, 2
    %v169 = vxor.u32 %v160, 2147483648
    %v170 = vsel %vm168, %v169, %v161
    %v171 = vsel %vm164, %v167, %v170
    %v172 = vsel %vm162, nan, %v171
    %v173 = vld [vmem:[#allocation2] sm:$0xff]
    %v174 = vld [vmem:[#allocation2 + $0x8] sm:$0xff]
    %v175 = vld [vmem:[#allocation2 + $0x10] sm:$0xff]
    %v176 = vld [vmem:[#allocation2 + $0x18] sm:$0xff]
    %v177 = vld [vmem:[#allocation2 + $0x20] sm:$0xff]
    %v178 = vld [vmem:[#allocation2 + $0x28] sm:$0xff]
    %v179 = vld [vmem:[#allocation2 + $0x30] sm:$0xff]
    %v180 = vld [vmem:[#allocation2 + $0x38] sm:$0xff]
    %v181 = vld [vmem:[#allocation2 + $0x40] sm:$0xff]
    %v182 = vld [vmem:[#allocation2 + $0x48] sm:$0xff]
    %v183 = vld [vmem:[#allocation2 + $0x50] sm:$0xff]
    %v184 = vld [vmem:[#allocation2 + $0x58] sm:$0xff]
    %v185 = vld [vmem:[#allocation2 + $0x60] sm:$0xff]
    %v186 = vld [vmem:[#allocation2 + $0x68] sm:$0xff]
    %v187 = vld [vmem:[#allocation2 + $0x70] sm:$0xff]
    %v188 = vld [vmem:[#allocation2 + $0x78] sm:$0xff]
    %v189 = vld [vmem:[%s3] sm:$0x1]
    %v191 = vlaneseq
    %v192 = vshrl.u32 %v191, 7
    %v193 = vsub.s32 0, %v192
    %v194 = vrot.slane %v189, %v193
    %196 = vmatprep.subr.mxu0 0.0
    %197 = vmatpush1.msra.mxu0 %v173
    %198 = vmatprep.subr.mxu0 0.0
    %199 = vmatpush1.msra.mxu0 %v174
    %200 = vmatprep.subr.mxu0 0.0
    %201 = vmatpush1.msra.mxu0 %v175
    %202 = vmatprep.subr.mxu0 0.0
    %203 = vmatpush1.msra.mxu0 %v176
    %204 = vmatprep.subr.mxu0 0.0
    %205 = vmatpush1.msra.mxu0 %v177
    %206 = vmatprep.subr.mxu0 0.0
    %207 = vmatpush1.msra.mxu0 %v178
    %208 = vmatprep.subr.mxu0 0.0
    %209 = vmatpush1.msra.mxu0 %v179
    %210 = vmatprep.subr.mxu0 0.0
    %211 = vmatpush1.msra.mxu0 %v180
    %212 = vmatprep.subr.mxu0 0.0
    %213 = vmatpush1.msra.mxu0 %v181
    %214 = vmatprep.subr.mxu0 0.0
    %215 = vmatpush1.msra.mxu0 %v182
    %216 = vmatprep.subr.mxu0 0.0
    %217 = vmatpush1.msra.mxu0 %v183
    %218 = vmatprep.subr.mxu0 0.0
    %219 = vmatpush1.msra.mxu0 %v184
    %220 = vmatprep.subr.mxu0 0.0
    %221 = vmatpush1.msra.mxu0 %v185
    %222 = vmatprep.subr.mxu0 0.0
    %223 = vmatpush1.msra.mxu0 %v186
    %224 = vmatprep.subr.mxu0 0.0
    %225 = vmatpush1.msra.mxu0 %v187
    %226 = vmatprep.subr.mxu0 0.0
    %227 = vmatpush1.msra.mxu0 %v188
    %228 = vmatprep.subr.mxu0 0.0
    %229 = vmatpush1.msra.mxu0 0.0
    %230 = vmatprep.subr.mxu0 0.0
    %231 = vmatpush1.msra.mxu0 0.0
    %232 = vmatprep.subr.mxu0 0.0
    %233 = vmatpush1.msra.mxu0 0.0
    %234 = vmatprep.subr.mxu0 0.0
    %235 = vmatpush1.msra.mxu0 0.0
    %236 = vmatprep.subr.mxu0 0.0
    %237 = vmatpush1.msra.mxu0 0.0
    %238 = vmatprep.subr.mxu0 0.0
    %239 = vmatpush1.msra.mxu0 0.0
    %240 = vmatprep.subr.mxu0 0.0
    %241 = vmatpush1.msra.mxu0 0.0
    %242 = vmatprep.subr.mxu0 0.0
    %243 = vmatpush1.msra.mxu0 0.0
    %244 = vmatprep.subr.mxu0 0.0
    %245 = vmatpush1.msra.mxu0 0.0
    %246 = vmatprep.subr.mxu0 0.0
    %247 = vmatpush1.msra.mxu0 0.0
    %248 = vmatprep.subr.mxu0 0.0
    %249 = vmatpush1.msra.mxu0 0.0
    %250 = vmatprep.subr.mxu0 0.0
    %251 = vmatpush1.msra.mxu0 0.0
    %252 = vmatprep.subr.mxu0 0.0
    %253 = vmatpush1.msra.mxu0 0.0
    %254 = vmatprep.subr.mxu0 0.0
    %255 = vmatpush1.msra.mxu0 0.0
    %256 = vmatprep.subr.mxu0 0.0
    %257 = vmatpush1.msra.mxu0 0.0
    %258 = vmatprep.subr.mxu0 0.0
    %259 = vmatpush1.msra.mxu0 0.0
    %260 = vmatprep.mubr.f32.mxu0 0.0
    %261 = vmatmul.mubr.f32.gmra.mrb[0].mxu0 %v172
    %v262 = vpop.f32.mrb[0].mxu0
    %v263 = vadd.f32 %v194, %v262
    %v264 = vpop.f32.mrb[0].mxu0
    %265 = vdwg.mxu0
    %v266 = vxor.u32 %v263, 2147483648
    %v267 = vmul.f32 %v266, 1.442695
    %v268 = vpow.pop %v267
    %v269 = vadd.f32 %v268, 1.0
    %v270 = vrcp.pop %v269
    %v271 = vmul.f32 1.0, %v270
    %v272 = vmul.f32 %v263, %v271
    %v273 = vld [vmem:[#allocation5] sm:$0xff]
    %v274 = vld [vmem:[#allocation5 + $0x8] sm:$0xff]
    %v275 = vld [vmem:[#allocation5 + $0x10] sm:$0xff]
    %v276 = vld [vmem:[#allocation5 + $0x18] sm:$0xff]
    %v277 = vld [vmem:[#allocation5 + $0x20] sm:$0xff]
    %v278 = vld [vmem:[#allocation5 + $0x28] sm:$0xff]
    %v279 = vld [vmem:[#allocation5 + $0x30] sm:$0xff]
    %v280 = vld [vmem:[#allocation5 + $0x38] sm:$0xff]
    %v281 = vld [vmem:[#allocation5 + $0x40] sm:$0xff]
    %v282 = vld [vmem:[#allocation5 + $0x48] sm:$0xff]
    %v283 = vld [vmem:[#allocation5 + $0x50] sm:$0xff]
    %v284 = vld [vmem:[#allocation5 + $0x58] sm:$0xff]
    %v285 = vld [vmem:[#allocation5 + $0x60] sm:$0xff]
    %v286 = vld [vmem:[#allocation5 + $0x68] sm:$0xff]
    %v287 = vld [vmem:[#allocation5 + $0x70] sm:$0xff]
    %v288 = vld [vmem:[#allocation5 + $0x78] sm:$0xff]
    %v289 = vld [vmem:[%s5] sm:$0x1]
    %v291 = vlaneseq
    %v292 = vshrl.u32 %v291, 7
    %v293 = vsub.s32 0, %v292
    %v294 = vrot.slane %v289, %v293
    %296 = vmatprep.subr.mxu0 0.0
    %297 = vmatpush1.msra.mxu0 %v273
    %298 = vmatprep.subr.mxu0 0.0
    %299 = vmatpush1.msra.mxu0 %v274
    %300 = vmatprep.subr.mxu0 0.0
    %301 = vmatpush1.msra.mxu0 %v275
    %302 = vmatprep.subr.mxu0 0.0
    %303 = vmatpush1.msra.mxu0 %v276
    %304 = vmatprep.subr.mxu0 0.0
    %305 = vmatpush1.msra.mxu0 %v277
    %306 = vmatprep.subr.mxu0 0.0
    %307 = vmatpush1.msra.mxu0 %v278
    %308 = vmatprep.subr.mxu0 0.0
    %309 = vmatpush1.msra.mxu0 %v279
    %310 = vmatprep.subr.mxu0 0.0
    %311 = vmatpush1.msra.mxu0 %v280
    %312 = vmatprep.subr.mxu0 0.0
    %313 = vmatpush1.msra.mxu0 %v281
    %314 = vmatprep.subr.mxu0 0.0
    %315 = vmatpush1.msra.mxu0 %v282
    %316 = vmatprep.subr.mxu0 0.0
    %317 = vmatpush1.msra.mxu0 %v283
    %318 = vmatprep.subr.mxu0 0.0
    %319 = vmatpush1.msra.mxu0 %v284
    %320 = vmatprep.subr.mxu0 0.0
    %321 = vmatpush1.msra.mxu0 %v285
    %322 = vmatprep.subr.mxu0 0.0
    %323 = vmatpush1.msra.mxu0 %v286
    %324 = vmatprep.subr.mxu0 0.0
    %325 = vmatpush1.msra.mxu0 %v287
    %326 = vmatprep.subr.mxu0 0.0
    %327 = vmatpush1.msra.mxu0 %v288
    %328 = vmatprep.subr.mxu0 0.0
    %329 = vmatpush1.msra.mxu0 0.0
    %330 = vmatprep.subr.mxu0 0.0
    %331 = vmatpush1.msra.mxu0 0.0
    %332 = vmatprep.subr.mxu0 0.0
    %333 = vmatpush1.msra.mxu0 0.0
    %334 = vmatprep.subr.mxu0 0.0
    %335 = vmatpush1.msra.mxu0 0.0
    %336 = vmatprep.subr.mxu0 0.0
    %337 = vmatpush1.msra.mxu0 0.0
    %338 = vmatprep.subr.mxu0 0.0
    %339 = vmatpush1.msra.mxu0 0.0
    %340 = vmatprep.subr.mxu0 0.0
    %341 = vmatpush1.msra.mxu0 0.0
    %342 = vmatprep.subr.mxu0 0.0
    %343 = vmatpush1.msra.mxu0 0.0
    %344 = vmatprep.subr.mxu0 0.0
    %345 = vmatpush1.msra.mxu0 0.0
    %346 = vmatprep.subr.mxu0 0.0
    %347 = vmatpush1.msra.mxu0 0.0
    %348 = vmatprep.subr.mxu0 0.0
    %349 = vmatpush1.msra.mxu0 0.0
    %350 = vmatprep.subr.mxu0 0.0
    %351 = vmatpush1.msra.mxu0 0.0
    %352 = vmatprep.subr.mxu0 0.0
    %353 = vmatpush1.msra.mxu0 0.0
    %354 = vmatprep.subr.mxu0 0.0
    %355 = vmatpush1.msra.mxu0 0.0
    %356 = vmatprep.subr.mxu0 0.0
    %357 = vmatpush1.msra.mxu0 0.0
    %358 = vmatprep.subr.mxu0 0.0
    %359 = vmatpush1.msra.mxu0 0.0
    %360 = vmatprep.mubr.f32.mxu0 0.0
    %361 = vmatmul.mubr.f32.gmra.mrb[0].mxu0 %v272
    %v362 = vpop.f32.mrb[0].mxu0
    %v363 = vadd.f32 %v294, %v362
    %v364 = vpop.f32.mrb[0].mxu0
    %365 = vdwg.mxu0
    %366 = vst [vmem:[#allocation7] sm:$0xff] %v363
    // Predicated region
    $region34: #{tpu_custom_call.1} parent=1 // pred_check
      _
    $region35: #{tpu_custom_call.1} parent=1 // pred_check_branch
      %368 = sbr.rel (0) target = $region37
    $region36: #{tpu_custom_call.1} parent=1 // pred_region
      %s370 = ssub.s32 128, 128
      %371 = vsyncadd [#allocation4], %s370
      %s373 = sshll.u32 [#allocation7], 4
      %s374 = int_to_ptr.vmem [resolvable:$true] %s373
      %376 = dma.vmem_to_hbm [thread:$0]  %s374, 128, %s6, [#allocation4]
    $region37: #{tpu_custom_call.1} parent=1 // pred_fallthru
      _
    // Predicated region
    $region38: #{tpu_custom_call.1} parent=1 // pred_check
      _
    $region39: #{tpu_custom_call.1} parent=1 // pred_check_branch
      %378 = sbr.rel (0) target = $region41
    $region40: #{tpu_custom_call.1} parent=1 // pred_region
      %379 = dma.done [#allocation4], 128
    $region41: #{tpu_custom_call.1} parent=1 // pred_fallthru
      _
    %380 = vsyncpa [#allocation3], 1
    %381 = vsyncpa [#allocation6], 1
    %382 = vsyncpa [#allocation4], 1

</llo_original>
